<compile_context>
chip_gen: v7x
topology: tpu7x:2x2x1
jax: 0.10.0
libtpu: 0.0.40
codegen_flags: <defaults>
</compile_context>

<pallas_src>
import functools
import math

import jax
import jax.numpy as jnp
from jax.experimental import pallas as pl
from jax.experimental.pallas import tpu as pltpu


# ----------------------------------------------------------------------------
# Kernel
# ----------------------------------------------------------------------------

def _erf(x):
    # Abramowitz & Stegun 7.1.26 rational approximation (max abs err ~1.5e-7).
    # TODO(synk): Mosaic has no guaranteed native erf lowering; torch.erf is
    # approximated here (error far below the bf16-matmul noise of this workload).
    a1, a2, a3, a4, a5 = 0.254829592, -0.284496736, 1.421413741, -1.453152027, 1.061405429
    p = 0.3275911
    sgn = jnp.where(x >= 0.0, 1.0, -1.0)
    ax = jnp.abs(x)
    # Divide -> EUP approximate reciprocal (frees the saturating VALU slot).
    t = pl.reciprocal(1.0 + p * ax, approx=True)
    poly = t * (a1 + t * (a2 + t * (a3 + t * (a4 + t * a5))))
    return sgn * (1.0 - poly * jnp.exp(-ax * ax))


def _head_transform_kernel(x_ref, w_ref, b_ref, g_ref, beta_ref, o_ref, *, eps):
    """One fused row-tile: y = LayerNorm(gelu(x @ w + b)) * gamma + beta."""
    # bf16 operands on the MXU, f32 accumulation.
    h = jnp.dot(x_ref[...], w_ref[...], preferred_element_type=jnp.float32)
    h = h + b_ref[...]

    # BERT GELU: x * 0.5 * (1 + erf(x / sqrt(2)))
    h = h * (0.5 * (1.0 + _erf(h * (1.0 / math.sqrt(2.0)))))

    # LayerNorm over the hidden axis — single statistics pass: var = E[h^2] - mu^2.
    inv_h = 1.0 / h.shape[-1]
    s1 = jnp.sum(h, axis=-1, keepdims=True)
    s2 = jnp.sum(h * h, axis=-1, keepdims=True)
    mu = s1 * inv_h
    var = jnp.maximum(s2 * inv_h - mu * mu, 0.0)   # clamp cancellation noise
    y = (h - mu) * jax.lax.rsqrt(var + eps)

    o_ref[...] = (y * g_ref[...] + beta_ref[...]).astype(o_ref.dtype)


# ----------------------------------------------------------------------------
# Wrapper
# ----------------------------------------------------------------------------

def bert_prediction_head_transform(hidden_states, w, b, gamma, beta,
                                   *, eps=1e-12, tm=None, out_dtype=None):
    """hidden_states: [..., H].  w: [H, H] stored as (in, out) == torch weight.T."""
    orig_shape = hidden_states.shape
    H = orig_shape[-1]
    x2 = hidden_states.reshape(-1, H)
    M = x2.shape[0]
    out_dtype = out_dtype if out_dtype is not None else hidden_states.dtype

    # bf16 MXU operands (accumulation stays f32 in-kernel); per-feature vectors stay f32.
    x2 = x2.astype(jnp.bfloat16)
    w = w.astype(jnp.bfloat16)
    b = b.reshape(1, H).astype(jnp.float32)
    gamma = gamma.reshape(1, H).astype(jnp.float32)
    beta = beta.reshape(1, H).astype(jnp.float32)

    # Row tile: largest multiple-of-8 tile up to 512 (amortizes ~0.35 us/step grid
    # overhead and lengthens uninterrupted MXU runs).  With bf16 x/W and the weight
    # single-buffered, tm=512 at H=1024 is ~8 MiB of VMEM — inside every chip's
    # scoped default.  Grid padding (pl.cdiv) handles M % tm; padded rows are
    # harmless (row-wise math, clamped var) and their stores are clipped.
    if tm is None:
        tm = min(M, 512) if M % 8 == 0 else M
    grid = (pl.cdiv(M, tm),)

    # Grid-invariant operands: constant index_map ⇒ no benefit from double-buffering.
    invariant = dict(pipeline_mode=pl.Buffered(1))

    out = pl.pallas_call(
        functools.partial(_head_transform_kernel, eps=eps),
        out_shape=jax.ShapeDtypeStruct((M, H), out_dtype),
        grid_spec=pltpu.PrefetchScalarGridSpec(
            num_scalar_prefetch=0,
            grid=grid,
            in_specs=[
                pl.BlockSpec((tm, H), lambda i: (i, 0)),               # activations: tiled rows
                pl.BlockSpec((H, H), lambda i: (0, 0), **invariant),   # weight: resident, reused
                pl.BlockSpec((1, H), lambda i: (0, 0), **invariant),   # bias
                pl.BlockSpec((1, H), lambda i: (0, 0), **invariant),   # LN gamma
                pl.BlockSpec((1, H), lambda i: (0, 0), **invariant),   # LN beta
            ],
            out_specs=pl.BlockSpec((tm, H), lambda i: (i, 0)),
        ),
        compiler_params=pltpu.CompilerParams(
            dimension_semantics=("parallel",),                         # shard rows across TCs
        ),
    )(x2, w, b, gamma, beta)

    return out.reshape(orig_shape)


# ----------------------------------------------------------------------------
# Pure-JAX reference, deterministic parameters + demo
# ----------------------------------------------------------------------------

def _reference(x, w, b, gamma, beta, eps=1e-12):
    h = x @ w + b
    h = 0.5 * h * (1.0 + jax.lax.erf(h / math.sqrt(2.0)))
    mu = jnp.mean(h, axis=-1, keepdims=True)
    var = jnp.mean((h - mu) ** 2, axis=-1, keepdims=True)
    return (h - mu) / jnp.sqrt(var + eps) * gamma + beta


def init_params(key, hidden):
    kw, kb = jax.random.split(key, 2)
    return {
        # stored as [in, out] (== torch nn.Linear weight transposed; same math)
        "dense_w": jax.random.normal(kw, (hidden, hidden), jnp.float32) * 0.02,
        "dense_b": jax.random.normal(kb, (hidden,), jnp.float32) * 0.02,
        "ln_g": jnp.ones((hidden,), jnp.float32),
        "ln_b": jnp.zeros((hidden,), jnp.float32),
    }


if __name__ == "__main__":
    B, S, HIDDEN = 2, 8, 32

    key = jax.random.PRNGKey(0)
    k_x, k_p = jax.random.split(key)

    hidden_states = jax.random.normal(k_x, (B, S, HIDDEN), jnp.float32)
    params = init_params(k_p, HIDDEN)

    out = bert_prediction_head_transform(
        hidden_states,
        params["dense_w"], params["dense_b"],
        params["ln_g"], params["ln_b"],
        eps=1e-12,
    )
    out = jax.block_until_ready(out)

    assert out.shape == (B, S, HIDDEN)
    assert bool(jnp.all(jnp.isfinite(out)))

    # Loose tolerance: kernel runs the matmul in bf16 (f32 accumulation).
    ref = _reference(hidden_states, params["dense_w"], params["dense_b"],
                     params["ln_g"], params["ln_b"])
    max_err = float(jnp.max(jnp.abs(out.astype(jnp.float32) - ref)))
    assert max_err < 0.1, f"max abs error vs reference too large: {max_err}"

    print("KERNEL_OK")
</pallas_src>

<mosaic_0001>
module attributes {stable_mosaic.version = 11 : i64} {
  func.func @_head_transform_kernel(%arg0: i32, %arg1: memref<16x32xbf16, #tpu.memory_space<vmem>>, %arg2: memref<32x32xbf16, #tpu.memory_space<vmem>>, %arg3: memref<1x32xf32, #tpu.memory_space<vmem>>, %arg4: memref<1x32xf32, #tpu.memory_space<vmem>>, %arg5: memref<1x32xf32, #tpu.memory_space<vmem>>, %arg6: memref<16x32xf32, #tpu.memory_space<vmem>>) attributes {dimension_semantics = [#tpu.dimension_semantics<parallel>], iteration_bounds = array<i64: 1>, scalar_prefetch = 0 : i64, scratch_operands = 0 : i64, tpu.core_type = #tpu.core_type<tc>, window_params = [{transform_indices = @transform_0, window_bounds = array<i64: 16, 32>}, {pipeline_mode = #tpu.pipeline_mode<synchronous>, transform_indices = @transform_1, window_bounds = array<i64: 32, 32>}, {pipeline_mode = #tpu.pipeline_mode<synchronous>, transform_indices = @transform_2, window_bounds = array<i64: 1, 32>}, {pipeline_mode = #tpu.pipeline_mode<synchronous>, transform_indices = @transform_3, window_bounds = array<i64: 1, 32>}, {pipeline_mode = #tpu.pipeline_mode<synchronous>, transform_indices = @transform_4, window_bounds = array<i64: 1, 32>}, {transform_indices = @transform_5, window_bounds = array<i64: 16, 32>}]} {
    %c0 = arith.constant 0 : index
    %c0_0 = arith.constant 0 : index
    %0 = vector.load %arg1[%c0, %c0_0] : memref<16x32xbf16, #tpu.memory_space<vmem>>, vector<16x32xbf16>
    %c0_1 = arith.constant 0 : index
    %c0_2 = arith.constant 0 : index
    %1 = vector.load %arg2[%c0_1, %c0_2] : memref<32x32xbf16, #tpu.memory_space<vmem>>, vector<32x32xbf16>
    %cst = arith.constant dense<0.000000e+00> : vector<16x32xf32>
    %2 = tpu.matmul %0, %1, %cst {dimension_numbers = #tpu.dot_dimension_numbers<[1], [0], [0], [1], [0, 0, 1, 1], [], []>} : vector<16x32xbf16>, vector<32x32xbf16>, vector<16x32xf32> -> vector<16x32xf32>
    %c0_3 = arith.constant 0 : index
    %c0_4 = arith.constant 0 : index
    %3 = vector.load %arg3[%c0_3, %c0_4] : memref<1x32xf32, #tpu.memory_space<vmem>>, vector<1x32xf32>
    %4 = vector.broadcast %3 : vector<1x32xf32> to vector<16x32xf32>
    %5 = arith.addf %2, %4 : vector<16x32xf32>
    %cst_5 = arith.constant 0.707106769 : f32
    %6 = vector.broadcast %cst_5 : f32 to vector<16x32xf32>
    %7 = arith.mulf %5, %6 : vector<16x32xf32>
    %cst_6 = arith.constant 0.000000e+00 : f32
    %8 = vector.broadcast %cst_6 : f32 to vector<16x32xf32>
    %9 = arith.cmpf oge, %7, %8 : vector<16x32xf32>
    %cst_7 = arith.constant 1.000000e+00 : f32
    %cst_8 = arith.constant -1.000000e+00 : f32
    %10 = vector.broadcast %cst_7 : f32 to vector<16x32xf32>
    %11 = vector.broadcast %cst_8 : f32 to vector<16x32xf32>
    %12 = arith.select %9, %10, %11 : vector<16x32xi1>, vector<16x32xf32>
    %13 = math.absf %7 : vector<16x32xf32>
    %cst_9 = arith.constant 0.327591091 : f32
    %14 = vector.broadcast %cst_9 : f32 to vector<16x32xf32>
    %15 = arith.mulf %14, %13 : vector<16x32xf32>
    %cst_10 = arith.constant 1.000000e+00 : f32
    %16 = vector.broadcast %cst_10 : f32 to vector<16x32xf32>
    %17 = arith.addf %16, %15 : vector<16x32xf32>
    %18 = tpu.reciprocal %17 {approx = true} : vector<16x32xf32> -> vector<16x32xf32>
    %cst_11 = arith.constant 1.06140542 : f32
    %19 = vector.broadcast %cst_11 : f32 to vector<16x32xf32>
    %20 = arith.mulf %18, %19 : vector<16x32xf32>
    %cst_12 = arith.constant -1.45315206 : f32
    %21 = vector.broadcast %cst_12 : f32 to vector<16x32xf32>
    %22 = arith.addf %21, %20 : vector<16x32xf32>
    %23 = arith.mulf %18, %22 : vector<16x32xf32>
    %cst_13 = arith.constant 1.42141378 : f32
    %24 = vector.broadcast %cst_13 : f32 to vector<16x32xf32>
    %25 = arith.addf %24, %23 : vector<16x32xf32>
    %26 = arith.mulf %18, %25 : vector<16x32xf32>
    %cst_14 = arith.constant -0.284496725 : f32
    %27 = vector.broadcast %cst_14 : f32 to vector<16x32xf32>
    %28 = arith.addf %27, %26 : vector<16x32xf32>
    %29 = arith.mulf %18, %28 : vector<16x32xf32>
    %cst_15 = arith.constant 0.254829586 : f32
    %30 = vector.broadcast %cst_15 : f32 to vector<16x32xf32>
    %31 = arith.addf %30, %29 : vector<16x32xf32>
    %32 = arith.mulf %18, %31 : vector<16x32xf32>
    %cst_16 = arith.constant 0.000000e+00 : f32
    %33 = vector.broadcast %cst_16 : f32 to vector<16x32xf32>
    %34 = arith.subf %33, %13 : vector<16x32xf32>
    %35 = arith.mulf %34, %13 : vector<16x32xf32>
    %36 = math.exp %35 : vector<16x32xf32>
    %37 = arith.mulf %32, %36 : vector<16x32xf32>
    %cst_17 = arith.constant 1.000000e+00 : f32
    %38 = vector.broadcast %cst_17 : f32 to vector<16x32xf32>
    %39 = arith.subf %38, %37 : vector<16x32xf32>
    %40 = arith.mulf %12, %39 : vector<16x32xf32>
    %cst_18 = arith.constant 1.000000e+00 : f32
    %41 = vector.broadcast %cst_18 : f32 to vector<16x32xf32>
    %42 = arith.addf %41, %40 : vector<16x32xf32>
    %cst_19 = arith.constant 5.000000e-01 : f32
    %43 = vector.broadcast %cst_19 : f32 to vector<16x32xf32>
    %44 = arith.mulf %43, %42 : vector<16x32xf32>
    %45 = arith.mulf %5, %44 : vector<16x32xf32>
    %cst_20 = arith.constant dense<0.000000e+00> : vector<16xf32>
    %46 = vector.multi_reduction <add>, %45, %cst_20 [1] : vector<16x32xf32> to vector<16xf32>
    %47 = vector.shape_cast %46 : vector<16xf32> to vector<16x1xf32>
    %48 = arith.mulf %45, %45 : vector<16x32xf32>
    %cst_21 = arith.constant dense<0.000000e+00> : vector<16xf32>
    %49 = vector.multi_reduction <add>, %48, %cst_21 [1] : vector<16x32xf32> to vector<16xf32>
    %50 = vector.shape_cast %49 : vector<16xf32> to vector<16x1xf32>
    %cst_22 = arith.constant 3.125000e-02 : f32
    %51 = vector.broadcast %cst_22 : f32 to vector<16x1xf32>
    %52 = arith.mulf %47, %51 : vector<16x1xf32>
    %cst_23 = arith.constant 3.125000e-02 : f32
    %53 = vector.broadcast %cst_23 : f32 to vector<16x1xf32>
    %54 = arith.mulf %50, %53 : vector<16x1xf32>
    %55 = arith.mulf %52, %52 : vector<16x1xf32>
    %56 = arith.subf %54, %55 : vector<16x1xf32>
    %cst_24 = arith.constant 0.000000e+00 : f32
    %57 = vector.broadcast %cst_24 : f32 to vector<16x1xf32>
    %58 = arith.maximumf %56, %57 : vector<16x1xf32>
    %59 = vector.broadcast %52 : vector<16x1xf32> to vector<16x32xf32>
    %60 = arith.subf %45, %59 : vector<16x32xf32>
    %cst_25 = arith.constant 9.99999996E-13 : f32
    %61 = vector.broadcast %cst_25 : f32 to vector<16x1xf32>
    %62 = arith.addf %58, %61 : vector<16x1xf32>
    %63 = math.rsqrt %62 : vector<16x1xf32>
    %64 = vector.broadcast %63 : vector<16x1xf32> to vector<16x32xf32>
    %65 = arith.mulf %60, %64 : vector<16x32xf32>
    %c0_26 = arith.constant 0 : index
    %c0_27 = arith.constant 0 : index
    %66 = vector.load %arg4[%c0_26, %c0_27] : memref<1x32xf32, #tpu.memory_space<vmem>>, vector<1x32xf32>
    %67 = vector.broadcast %66 : vector<1x32xf32> to vector<16x32xf32>
    %68 = arith.mulf %65, %67 : vector<16x32xf32>
    %c0_28 = arith.constant 0 : index
    %c0_29 = arith.constant 0 : index
    %69 = vector.load %arg5[%c0_28, %c0_29] : memref<1x32xf32, #tpu.memory_space<vmem>>, vector<1x32xf32>
    %70 = vector.broadcast %69 : vector<1x32xf32> to vector<16x32xf32>
    %71 = arith.addf %68, %70 : vector<16x32xf32>
    %c0_30 = arith.constant 0 : index
    %c0_31 = arith.constant 0 : index
    %72 = vector.load %arg6[%c0_30, %c0_31] : memref<16x32xf32, #tpu.memory_space<vmem>>, vector<16x32xf32>
    tpu.vector_store %arg6[%c0_30, %c0_31], %71 {strides = array<i32>} : memref<16x32xf32, #tpu.memory_space<vmem>>, vector<16x32xf32>,
    return
  }
  func.func @transform_0(%arg0: i32) -> (i32, i32) {
    %c0_i32 = arith.constant 0 : i32
    %c0_i32_0 = arith.constant 0 : i32
    return %arg0, %c0_i32 : i32, i32
  }
  func.func @transform_1(%arg0: i32) -> (i32, i32) {
    %c0_i32 = arith.constant 0 : i32
    %c0_i32_0 = arith.constant 0 : i32
    %c0_i32_1 = arith.constant 0 : i32
    return %c0_i32, %c0_i32_0 : i32, i32
  }
  func.func @transform_2(%arg0: i32) -> (i32, i32) {
    %c0_i32 = arith.constant 0 : i32
    %c0_i32_0 = arith.constant 0 : i32
    %c0_i32_1 = arith.constant 0 : i32
    return %c0_i32, %c0_i32_0 : i32, i32
  }
  func.func @transform_3(%arg0: i32) -> (i32, i32) {
    %c0_i32 = arith.constant 0 : i32
    %c0_i32_0 = arith.constant 0 : i32
    %c0_i32_1 = arith.constant 0 : i32
    return %c0_i32, %c0_i32_0 : i32, i32
  }
  func.func @transform_4(%arg0: i32) -> (i32, i32) {
    %c0_i32 = arith.constant 0 : i32
    %c0_i32_0 = arith.constant 0 : i32
    %c0_i32_1 = arith.constant 0 : i32
    return %c0_i32, %c0_i32_0 : i32, i32
  }
  func.func @transform_5(%arg0: i32) -> (i32, i32) {
    %c0_i32 = arith.constant 0 : i32
    %c0_i32_0 = arith.constant 0 : i32
    return %arg0, %c0_i32 : i32, i32
  }
}

</mosaic_0001>

<llo_original>
// kernel: tpu_custom_call.1
$region0: #{tpu_custom_call.1}
  #allocation0 [shape = 'u32[]', space=smem, size = 0x4, offset = 0x4, fixed_abs, tag = 'smem constant byte address 0x4 - core index']
  #allocation1 [shape = 'u32[144,128]{1,0:T(1,128)}', space=vmem, size = 0x12000, scoped, tag = 'internal scratch']
  %s0 = inlined_call_operand.hbm [shape: bf16[16,32], index: 0, kind: input, shape index: {}]
  %s1 = inlined_call_operand.hbm [shape: bf16[32,32], index: 1, kind: input, shape index: {}]
  %s2 = inlined_call_operand.vmem [shape: f32[1,32], index: 2, kind: input, shape index: {}]
  %s3 = inlined_call_operand.vmem [shape: f32[1,32], index: 3, kind: input, shape index: {}]
  %s4 = inlined_call_operand.vmem [shape: f32[1,32], index: 4, kind: input, shape index: {}]
  %s5 = inlined_call_operand.hbm [shape: f32[16,32], index: 5, kind: output, shape index: {}]
  %s6 = sld [smem:[#allocation0]]
  $region38: #{tpu_custom_call.1} parent=0
    _
  %s8 = ssub.s32 1, %s6
  %s9 = scalar_select 0, %s8, %s6
  $region1: #{tpu_custom_call.1} parent=0
    #allocation2 [shape = 'u8[4096]{0}', space=vmem, size = 0x1000, scoped, tag = 'input window, operand 0, single buffered']
    #allocation3 [shape = 's32[1]{0}', space=sflag, size = 0x4, scoped, tag = 'scoped memory for tpu_custom_call.1']
    #allocation4 [shape = 's32[1]{0}', space=sflag, size = 0x4, scoped, tag = 'scoped memory for tpu_custom_call.1']
    #allocation5 [shape = 'u8[8192]{0}', space=vmem, size = 0x2000, scoped, tag = 'input window, operand 1, single buffered']
    #allocation6 [shape = 's32[1]{0}', space=sflag, size = 0x4, scoped, tag = 'scoped memory for tpu_custom_call.1']
    #allocation7 [shape = 'u8[8192]{0}', space=vmem, size = 0x2000, scoped, tag = 'output window, operand 0, single buffered']
    %10 = vsyncpa [#allocation3], 0
    %11 = vsyncpa [#allocation6], 0
    %12 = vsyncpa [#allocation4], 0
    // Predicated region
    $region2: #{tpu_custom_call.1} parent=1 // pred_check
      _
    $region3: #{tpu_custom_call.1} parent=1 // pred_check_branch
      %14 = sbr.rel (0) target = $region5
    $region4: #{tpu_custom_call.1} parent=1 // pred_region
      %s16 = ssub.s32 128, 128
      %17 = vsyncadd [#allocation3], %s16
      %s18 = sshll.u32 [#allocation2], 4
      %s19 = int_to_ptr.vmem [resolvable:$true] %s18
      %24 = dma.hbm_to_vmem [thread:$0]  %s0, 128, %s19, [#allocation3], 64, 64, 4
    $region5: #{tpu_custom_call.1} parent=1 // pred_fallthru
      _
    // Predicated region
    $region6: #{tpu_custom_call.1} parent=1 // pred_check
      _
    $region7: #{tpu_custom_call.1} parent=1 // pred_check_branch
      %26 = sbr.rel (0) target = $region9
    $region8: #{tpu_custom_call.1} parent=1 // pred_region
      %s28 = ssub.s32 256, 256
      %29 = vsyncadd [#allocation6], %s28
      %s30 = sshll.u32 [#allocation5], 4
      %s31 = int_to_ptr.vmem [resolvable:$true] %s30
      %36 = dma.hbm_to_vmem [thread:$0]  %s1, 256, %s31, [#allocation6], 64, 64, 4
    $region9: #{tpu_custom_call.1} parent=1 // pred_fallthru
      _
    // Predicated region
    $region10: #{tpu_custom_call.1} parent=1 // pred_check
      _
    $region11: #{tpu_custom_call.1} parent=1 // pred_check_branch
      %38 = sbr.rel (0) target = $region13
    $region12: #{tpu_custom_call.1} parent=1 // pred_region
      _
    $region13: #{tpu_custom_call.1} parent=1 // pred_fallthru
      _
    // Predicated region
    $region14: #{tpu_custom_call.1} parent=1 // pred_check
      _
    $region15: #{tpu_custom_call.1} parent=1 // pred_check_branch
      %40 = sbr.rel (0) target = $region17
    $region16: #{tpu_custom_call.1} parent=1 // pred_region
      _
    $region17: #{tpu_custom_call.1} parent=1 // pred_fallthru
      _
    // Predicated region
    $region18: #{tpu_custom_call.1} parent=1 // pred_check
      _
    $region19: #{tpu_custom_call.1} parent=1 // pred_check_branch
      %42 = sbr.rel (0) target = $region21
    $region20: #{tpu_custom_call.1} parent=1 // pred_region
      _
    $region21: #{tpu_custom_call.1} parent=1 // pred_fallthru
      _
    // Predicated region
    $region22: #{tpu_custom_call.1} parent=1 // pred_check
      _
    $region23: #{tpu_custom_call.1} parent=1 // pred_check_branch
      %44 = sbr.rel (0) target = $region25
    $region24: #{tpu_custom_call.1} parent=1 // pred_region
      %45 = dma.done [#allocation3], 128
    $region25: #{tpu_custom_call.1} parent=1 // pred_fallthru
      _
    // Predicated region
    $region26: #{tpu_custom_call.1} parent=1 // pred_check
      _
    $region27: #{tpu_custom_call.1} parent=1 // pred_check_branch
      %47 = sbr.rel (0) target = $region29
    $region28: #{tpu_custom_call.1} parent=1 // pred_region
      %48 = dma.done [#allocation6], 256
    $region29: #{tpu_custom_call.1} parent=1 // pred_fallthru
      _
    %v50 = vld [vmem:[#allocation2] sm:$0xf]
    %v51 = vld [vmem:[#allocation2 + $0x4] sm:$0xf]
    %v52 = vld [vmem:[#allocation5] sm:$0xf]
    %v53 = vld [vmem:[#allocation5 + $0x4] sm:$0xf]
    %v54 = vld [vmem:[#allocation5 + $0x8] sm:$0xf]
    %v55 = vld [vmem:[#allocation5 + $0xc] sm:$0xf]
    %v56 = vld [vmem:[%s2] sm:$0x1]
    %v58 = vlaneseq
    %v59 = vshrl.u32 %v58, 7
    %v60 = vsub.s32 0, %v59
    %v61 = vrot.slane %v56, %v60
    %v65 = vunpack.c.l.b16 %v50
    %v66 = vunpack.c.l.b16 %v51
    %v67 = vpack.c.b16 %v66, %v65
    %v72 = vunpack.c.l.b16 %v52
    %v73 = vunpack.c.l.b16 %v53
    %v74 = vunpack.c.l.b16 %v54
    %v75 = vunpack.c.l.b16 %v55
    %v76 = vpack.c.b16 %v73, %v72
    %v77 = vpack.c.b16 %v75, %v74
    %vm80 = vcmask 261120
    %v82 = vsel %vm80, %v67, 0
    %84 = vmatprep.subr.bf16.mxu0 0
    %85 = vmatpush1.bf16.msra.mxu0 %v76
    %86 = vmatprep.subr.bf16.mxu0 0
    %87 = vmatpush1.bf16.msra.mxu0 %v77
    %88 = vmatprep.subr.bf16.mxu0 0
    %89 = vmatpush1.bf16.msra.mxu0 0
    %90 = vmatprep.subr.bf16.mxu0 0
    %91 = vmatpush1.bf16.msra.mxu0 0
    %92 = vmatprep.subr.bf16.mxu0 0
    %93 = vmatpush1.bf16.msra.mxu0 0
    %94 = vmatprep.subr.bf16.mxu0 0
    %95 = vmatpush1.bf16.msra.mxu0 0
    %96 = vmatprep.subr.bf16.mxu0 0
    %97 = vmatpush1.bf16.msra.mxu0 0
    %98 = vmatprep.subr.bf16.mxu0 0
    %99 = vmatpush1.bf16.msra.mxu0 0
    %100 = vmatprep.subr.bf16.mxu0 0
    %101 = vmatpush1.bf16.msra.mxu0 0
    %102 = vmatprep.subr.bf16.mxu0 0
    %103 = vmatpush1.bf16.msra.mxu0 0
    %104 = vmatprep.subr.bf16.mxu0 0
    %105 = vmatpush1.bf16.msra.mxu0 0
    %106 = vmatprep.subr.bf16.mxu0 0
    %107 = vmatpush1.bf16.msra.mxu0 0
    %108 = vmatprep.subr.bf16.mxu0 0
    %109 = vmatpush1.bf16.msra.mxu0 0
    %110 = vmatprep.subr.bf16.mxu0 0
    %111 = vmatpush1.bf16.msra.mxu0 0
    %112 = vmatprep.subr.bf16.mxu0 0
    %113 = vmatpush1.bf16.msra.mxu0 0
    %114 = vmatprep.subr.bf16.mxu0 0
    %115 = vmatpush1.bf16.msra.mxu0 0
    %116 = vmatprep.mubr.bf16.mxu0 0
    %117 = vmatmul.mubr.bf16.gmra.mrb[0].mxu0 %v82
    %v118 = vpop.f32.mrb[0].mxu0
    %v119 = vadd.f32 %v61, %v118
    %v120 = vpop.f32.mrb[0].mxu0
    %v121 = vpop.f32.mrb[0].mxu0
    %v122 = vadd.f32 %v61, %v121
    %v123 = vpop.f32.mrb[0].mxu0
    %124 = vdwg.mxu0
    %v125 = vmul.f32 %v119, 0.70710677
    %v126 = vmul.f32 %v122, 0.70710677
    %vm127 = vcmp.ge.f32.partialorder %v125, 0.0
    %vm128 = vcmp.ge.f32.partialorder %v126, 0.0
    %v129 = vsel %vm127, 1.0, -1.0
    %v130 = vsel %vm128, 1.0, -1.0
    %v131 = vand.u32 2147483647, %v125
    %v132 = vand.u32 2147483647, %v126
    %v133 = vmul.f32 %v131, 0.3275911
    %v134 = vmul.f32 %v132, 0.3275911
    %v135 = vadd.f32 %v133, 1.0
    %v136 = vadd.f32 %v134, 1.0
    %v137 = vrcp.pop %v135
    %v138 = vrcp.pop %v136
    %v139 = vmul.f32 %v137, 1.0614054
    %v140 = vmul.f32 %v138, 1.0614054
    %v141 = vadd.f32 %v139, -1.4531521
    %v142 = vadd.f32 %v140, -1.4531521
    %v143 = vmul.f32 %v137, %v141
    %v144 = vmul.f32 %v138, %v142
    %v145 = vadd.f32 %v143, 1.4214138
    %v146 = vadd.f32 %v144, 1.4214138
    %v147 = vmul.f32 %v137, %v145
    %v148 = vmul.f32 %v138, %v146
    %v149 = vadd.f32 %v147, -0.28449672
    %v150 = vadd.f32 %v148, -0.28449672
    %v151 = vmul.f32 %v137, %v149
    %v152 = vmul.f32 %v138, %v150
    %v153 = vadd.f32 %v151, 0.2548296
    %v154 = vadd.f32 %v152, 0.2548296
    %v155 = vmul.f32 %v137, %v153
    %v156 = vmul.f32 %v138, %v154
    %v157 = vsub.f32 0.0, %v131
    %v158 = vsub.f32 0.0, %v132
    %v159 = vmul.f32 %v157, %v131
    %v160 = vmul.f32 %v158, %v132
    %v161 = vmul.f32 %v159, 1.442695
    %v162 = vpow.pop %v161
    %v163 = vmul.f32 %v160, 1.442695
    %v164 = vpow.pop %v163
    %v165 = vmul.f32 %v155, %v162
    %v166 = vmul.f32 %v156, %v164
    %v167 = vsub.f32 1.0, %v165
    %v168 = vsub.f32 1.0, %v166
    %v169 = vmul.f32 %v129, %v167
    %v170 = vmul.f32 %v130, %v168
    %v171 = vadd.f32 %v169, 1.0
    %v172 = vadd.f32 %v170, 1.0
    %v173 = vmul.f32 %v171, 0.5
    %v174 = vmul.f32 %v172, 0.5
    %v175 = vmul.f32 %v119, %v173
    %v176 = vmul.f32 %v122, %v174
    %v177 = vsel %vm80, %v175, 0.0
    %178 = vadd.xlane.f32.xlu0 %v177
    %v179 = vpop.xlane.xlu0 %178
    %v180 = vsel %vm80, %v176, 0.0
    %181 = vadd.xlane.f32.xlu0 %v180
    %v182 = vpop.xlane.xlu0 %181
    %v183 = vmul.f32 %v175, %v175
    %v184 = vmul.f32 %v176, %v176
    %v185 = vsel %vm80, %v183, 0.0
    %186 = vadd.xlane.f32.xlu0 %v185
    %v187 = vpop.xlane.xlu0 %186
    %v188 = vsel %vm80, %v184, 0.0
    %189 = vadd.xlane.f32.xlu0 %v188
    %v190 = vpop.xlane.xlu0 %189
    %v191 = vmul.f32 %v179, 0.03125
    %v192 = vmul.f32 %v182, 0.03125
    %v193 = vmul.f32 %v187, 0.03125
    %v194 = vmul.f32 %v190, 0.03125
    %v195 = vmul.f32 %v191, %v191
    %v196 = vmul.f32 %v192, %v192
    %v197 = vsub.f32 %v193, %v195
    %v198 = vsub.f32 %v194, %v196
    %v199 = vmax.f32 %v197, 0.0
    %v200 = vmax.f32 %v198, 0.0
    %v201 = vsub.f32 %v175, %v191
    %v202 = vsub.f32 %v176, %v192
    %v203 = vadd.f32 %v199, 1e-12
    %v204 = vadd.f32 %v200, 1e-12
    %v205 = vrsqrt.pop %v203
    %v206 = vrsqrt.pop %v204
    %v207 = vmul.f32 %v201, %v205
    %v208 = vmul.f32 %v202, %v206
    %v209 = vld [vmem:[%s3] sm:$0x1]
    %v211 = vlaneseq
    %v212 = vshrl.u32 %v211, 7
    %v213 = vsub.s32 0, %v212
    %v214 = vrot.slane %v209, %v213
    %v216 = vmul.f32 %v207, %v214
    %v217 = vmul.f32 %v208, %v214
    %v218 = vld [vmem:[%s4] sm:$0x1]
    %v220 = vlaneseq
    %v221 = vshrl.u32 %v220, 7
    %v222 = vsub.s32 0, %v221
    %v223 = vrot.slane %v218, %v222
    %v225 = vadd.f32 %v216, %v223
    %v226 = vadd.f32 %v217, %v223
    %227 = vst.msk [vmem:[#allocation7] sm:$0xff] %vm80, %v225
    %228 = vst.msk [vmem:[#allocation7 + $0x8] sm:$0xff] %vm80, %v226
    // Predicated region
    $region30: #{tpu_custom_call.1} parent=1 // pred_check
      _
    $region31: #{tpu_custom_call.1} parent=1 // pred_check_branch
      %230 = sbr.rel (0) target = $region33
    $region32: #{tpu_custom_call.1} parent=1 // pred_region
      %s232 = ssub.s32 256, 256
      %233 = vsyncadd [#allocation4], %s232
      %s234 = sshll.u32 [#allocation7], 4
      %s235 = int_to_ptr.vmem [resolvable:$true] %s234
      %240 = dma.vmem_to_hbm [thread:$0]  %s235, 256, %s5, [#allocation4], 128, 128, 8
    $region33: #{tpu_custom_call.1} parent=1 // pred_fallthru
      _
    // Predicated region
    $region34: #{tpu_custom_call.1} parent=1 // pred_check
      _
    $region35: #{tpu_custom_call.1} parent=1 // pred_check_branch
      %242 = sbr.rel (0) target = $region37
    $region36: #{tpu_custom_call.1} parent=1 // pred_region
      %243 = dma.done [#allocation4], 256
    $region37: #{tpu_custom_call.1} parent=1 // pred_fallthru
      _
    %244 = vsyncpa [#allocation3], 1
    %245 = vsyncpa [#allocation6], 1
    %246 = vsyncpa [#allocation4], 1

</llo_original>
